<compile_context>
chip_gen: v5e
topology: v5e:2x2
jax: 0.10.0
libtpu: 0.0.40
codegen_flags: <defaults>
</compile_context>

<pallas_src>
import math

import jax
import jax.numpy as jnp
from jax.experimental import pallas as pl
from jax.experimental.pallas import tpu as pltpu

_LANE = 128
_SUBLANE = 8
# Per-tile VMEM buffer budget.  Double-buffered input + output ~= 4 buffers,
# so 1 MiB/tile keeps us well inside every generation's scoped-VMEM default.
_TARGET_TILE_BYTES = 1 << 20


def _identity_kernel(x_ref, o_ref):
    # Straight VMEM -> VMEM copy of the current tile.
    o_ref[...] = x_ref[...]


def _rows_cap(cols, itemsize):
    cap = (_TARGET_TILE_BYTES // (cols * itemsize)) // _SUBLANE * _SUBLANE
    return max(_SUBLANE, cap)


def _plan_2d(total, itemsize):
    """Pick a lane/sublane-dense 2-D slab (cols, rows, pad_elems)."""
    # Prefer a wider lane-dense last dim when the slab stays tileable:
    # either it fits in a single full-shape block, or rows is a multiple of 8
    # so a (tile_rows % 8 == 0, cols % 128 == 0) block is legal.
    for cols in (1024, 512, 256, 128):
        if total % cols:
            continue
        rows = total // cols
        if rows <= _rows_cap(cols, itemsize) or rows % _SUBLANE == 0:
            return cols, rows, 0
    # Fallback: pad the flat vector up to a multiple of 8*128 so the slab is
    # still sublane/lane dense (never a (1, N) layout).
    chunk = _SUBLANE * _LANE
    padded = pl.cdiv(total, chunk) * chunk
    return _LANE, padded // _LANE, padded - total


def _identity_copy_2d(x2d):
    """Identity copy of a 2-D (rows, cols) slab via a tiled, aliased kernel."""
    rows, cols = x2d.shape
    itemsize = jnp.dtype(x2d.dtype).itemsize
    cap = _rows_cap(cols, itemsize)
    tile_rows = rows if rows <= cap else cap
    grid_n = pl.cdiv(rows, tile_rows)

    return pl.pallas_call(
        _identity_kernel,
        out_shape=jax.ShapeDtypeStruct((rows, cols), x2d.dtype),
        grid_spec=pltpu.PrefetchScalarGridSpec(
            num_scalar_prefetch=0,
            grid=(grid_n,),
            in_specs=[pl.BlockSpec((tile_rows, cols), lambda i: (i, 0))],
            out_specs=pl.BlockSpec((tile_rows, cols), lambda i: (i, 0)),
        ),
        compiler_params=pltpu.CompilerParams(
            dimension_semantics=("parallel",),
        ),
        # Output aliases input: no extra HBM traffic for the identity.
        input_output_aliases={0: 0},
    )(x2d)


def _identity_impl(x):
    orig_shape = x.shape
    total = math.prod(orig_shape) if orig_shape else 1
    if total == 0:
        return x
    cols, rows, pad = _plan_2d(total, jnp.dtype(x.dtype).itemsize)
    flat = x.reshape(total)
    if pad:
        flat = jnp.concatenate([flat, jnp.zeros((pad,), x.dtype)])
    y2d = _identity_copy_2d(flat.reshape(rows, cols))
    yflat = y2d.reshape(rows * cols)
    if pad:
        yflat = yflat[:total]
    return yflat.reshape(orig_shape)


_identity_jit = jax.jit(_identity_impl)


class PrintShape:
    """JAX/Pallas equivalent of the PyTorch PrintShape module."""

    def __init__(self, message, use_pallas_copy=True):
        self.mes = message
        self.use_pallas_copy = use_pallas_copy

    def __call__(self, x):
        # Host-side print of message + shape (matches torch eager semantics;
        # under jax.jit this fires once per trace, not once per call).
        print(self.mes, tuple(x.shape))
        if not self.use_pallas_copy:
            # Zero-cost path: PrintShape is a data identity, no HBM traffic.
            return x
        return _identity_jit(x)


if __name__ == "__main__":
    key = jax.random.PRNGKey(0)
    mod = PrintShape("shape:")

    # Small NCHW input consistent with a conv-style autoencoder pipeline.
    x = jax.random.normal(key, (2, 4, 16, 16), dtype=jnp.float32)
    y = jax.block_until_ready(mod(x))
    assert y.shape == x.shape and y.dtype == x.dtype
    assert bool(jnp.all(y == x))

    # Exercise the non-128-divisible (padded) fallback path.
    x2 = jax.random.normal(jax.random.PRNGKey(0), (3, 5, 7), dtype=jnp.float32)
    y2 = jax.block_until_ready(mod(x2))
    assert y2.shape == x2.shape and y2.dtype == x2.dtype
    assert bool(jnp.all(y2 == x2))

    # Zero-copy variant (review's preferred path) still matches.
    y3 = jax.block_until_ready(PrintShape("shape:", use_pallas_copy=False)(x))
    assert bool(jnp.all(y3 == x))

    print("KERNEL_OK")
</pallas_src>

<mosaic_0001>
module attributes {stable_mosaic.version = 11 : i64} {
  func.func @_identity_kernel(%arg0: i32, %arg1: memref<2x1024xf32, #tpu.memory_space<vmem>>, %arg2: memref<2x1024xf32, #tpu.memory_space<vmem>>) attributes {dimension_semantics = [#tpu.dimension_semantics<parallel>], iteration_bounds = array<i64: 1>, scalar_prefetch = 0 : i64, scratch_operands = 0 : i64, tpu.core_type = #tpu.core_type<tc>, window_params = [{transform_indices = @transform_0, window_bounds = array<i64: 2, 1024>}, {transform_indices = @transform_1, window_bounds = array<i64: 2, 1024>}]} {
    %c0 = arith.constant 0 : index
    %c0_0 = arith.constant 0 : index
    %0 = vector.load %arg1[%c0, %c0_0] : memref<2x1024xf32, #tpu.memory_space<vmem>>, vector<2x1024xf32>
    %c0_1 = arith.constant 0 : index
    %c0_2 = arith.constant 0 : index
    %1 = vector.load %arg2[%c0_1, %c0_2] : memref<2x1024xf32, #tpu.memory_space<vmem>>, vector<2x1024xf32>
    tpu.vector_store %arg2[%c0_1, %c0_2], %0 {strides = array<i32>} : memref<2x1024xf32, #tpu.memory_space<vmem>>, vector<2x1024xf32>,
    return
  }
  func.func @transform_0(%arg0: i32) -> (i32, i32) {
    %c0_i32 = arith.constant 0 : i32
    %c0_i32_0 = arith.constant 0 : i32
    return %arg0, %c0_i32 : i32, i32
  }
  func.func @transform_1(%arg0: i32) -> (i32, i32) {
    %c0_i32 = arith.constant 0 : i32
    %c0_i32_0 = arith.constant 0 : i32
    return %arg0, %c0_i32 : i32, i32
  }
}

</mosaic_0001>

<llo_original>
// kernel: _identity_impl.1
$region0: #{_identity_impl.1}
  #allocation0 [shape = 'u32[]', space=smem, size = 0x4, offset = 0x4, fixed_abs, tag = 'smem constant byte address 0x4 - core index']
  #allocation1 [shape = 'u32[72,128]{1,0:T(1,128)}', space=vmem, size = 0x9000, scoped, tag = 'internal scratch']
  %s0 = inlined_call_operand.vmem [shape: f32[2,1024], index: 0, kind: input, shape index: {}, may-alias: {0,1}]
  %s1 = inlined_call_operand.vmem [shape: f32[2,1024], index: 1, kind: output, shape index: {}, may-alias: {0,1}]
  %s2 = sld [smem:[#allocation0]]
  $region14: #{_identity_impl.1} parent=0
    _
  %s4 = ssub.s32 1, %s2
  %s5 = scalar_select 0, %s4, %s2
  // Predicated region
  $region2: #{_identity_impl.1} parent=0 // pred_check
    _
  $region3: #{_identity_impl.1} parent=0 // pred_check_branch
    %7 = sbr.rel (0) target = $region5
  $region4: #{_identity_impl.1} parent=0 // pred_region
    _
  $region5: #{_identity_impl.1} parent=0 // pred_fallthru
    _
  %v8 = vld [vmem:[%s0] sm:$0xff]
  %v9 = vld [vmem:[%s0 + $0x8] sm:$0xff]
  %10 = vst [vmem:[%s1] sm:$0xff] %v8
  %11 = vst [vmem:[%s1 + $0x8] sm:$0xff] %v9
  // Predicated region
  $region6: #{_identity_impl.1} parent=0 // pred_check
    _
  $region7: #{_identity_impl.1} parent=0 // pred_check_branch
    %13 = sbr.rel (0) target = $region9
  $region8: #{_identity_impl.1} parent=0 // pred_region
    _
  $region9: #{_identity_impl.1} parent=0 // pred_fallthru
    _
  // Predicated region
  $region10: #{_identity_impl.1} parent=0 // pred_check
    _
  $region11: #{_identity_impl.1} parent=0 // pred_check_branch
    %15 = sbr.rel (0) target = $region13
  $region12: #{_identity_impl.1} parent=0 // pred_region
    _
  $region13: #{_identity_impl.1} parent=0 // pred_fallthru
    _

</llo_original>
